<compile_context>
chip_gen: v6e
topology: v6e:2x2x1
jax: 0.10.0
libtpu: 0.0.40
codegen_flags: <defaults>
</compile_context>

<pallas_src>
import math
import functools

import jax
import jax.numpy as jnp
from jax.experimental import pallas as pl
from jax.experimental.pallas import tpu as pltpu

LN_EPS = 1e-5


def _round_up(x, m):
    return ((x + m - 1) // m) * m


def _cdiv(a, b):
    return (a + b - 1) // b


# ----------------------------------------------------------------------------
# Kernel
# ----------------------------------------------------------------------------
def representation_kernel(
    obs_ref,      # (TILE_B, OBS_PAD)            f32
    w0_ref,       # (OBS_PAD, D_PAD)             weight dtype (bf16 / f32)
    vec0_ref,     # (3, D_PAD)                   f32 rows: b0, g0, be0
    wblk_ref,     # (2*NB, D_PAD, D_PAD)         weight dtype; [2i]=W1_i, [2i+1]=W2_i
    vecblk_ref,   # (NB, 6, D_PAD)               f32 rows: b1, g1, be1, b2, g2, be2
    out_ref,      # (TILE_B, D_PAD)              f32
    *,
    d_real,
    unroll,
):
    num_blocks = vecblk_ref.shape[0]
    inv_d = jnp.float32(1.0 / d_real)
    mm_dtype = w0_ref.dtype   # matmul LHS cast target (bf16 weights -> bf16 LHS)

    def layernorm(x, gamma, beta):
        # Padded lanes of x are exactly zero, so sums over the full padded
        # lane range divided by D_real are the real-lane statistics; no mask
        # pass needed.  var = E[x^2] - mu^2 (biased, matches PyTorch).
        mu = jnp.sum(x, axis=-1, keepdims=True) * inv_d
        ex2 = jnp.sum(x * x, axis=-1, keepdims=True) * inv_d
        var = ex2 - mu * mu
        # gamma/beta are zero on padded lanes -> padded lanes stay zero.
        return (x - mu) * jax.lax.rsqrt(var + LN_EPS) * gamma + beta

    # ---- obs_block: Linear -> LayerNorm -> Tanh (LN/tanh in f32) ----
    v0 = vec0_ref[...]
    x = jnp.dot(obs_ref[...].astype(mm_dtype), w0_ref[...],
                preferred_element_type=jnp.float32) + v0[0:1]
    x = jnp.tanh(layernorm(x, v0[1:2], v0[2:3]))

    def res_block(x, w1, w2, vb):
        h1 = jax.nn.relu(layernorm(x, vb[1:2], vb[2:3])).astype(mm_dtype)
        x1 = jnp.dot(h1, w1, preferred_element_type=jnp.float32) + vb[0:1]
        h2 = jax.nn.relu(layernorm(x1, vb[4:5], vb[5:6])).astype(mm_dtype)
        x2 = jnp.dot(h2, w2, preferred_element_type=jnp.float32) + vb[3:4]
        return x + x2

    if unroll:
        # Shallow towers: static unroll, all slices static.
        for i in range(num_blocks):
            x = res_block(x, wblk_ref[2 * i], wblk_ref[2 * i + 1],
                          vecblk_ref[i])
    else:
        # Deep towers: compact loop body (bounded live ranges / vregs),
        # dynamic first-axis ref indexing for the per-block parameters.
        def body(i, x):
            return res_block(x, wblk_ref[2 * i], wblk_ref[2 * i + 1],
                             vecblk_ref[i])
        x = jax.lax.fori_loop(0, num_blocks, body, x)

    out_ref[...] = x.astype(out_ref.dtype)


# ----------------------------------------------------------------------------
# Wrapper
# ----------------------------------------------------------------------------
def _choose_batch_tiling(B, max_tile_b):
    """Adaptive batch tiling: bound padded-row waste and keep >= 2 grid steps
    (so both v7x TensorCores get work) whenever the batch is big enough."""
    max_tile_b = max(8, _round_up(max_tile_b, 8))
    n_tiles = max(_cdiv(B, max_tile_b), 2 if B > 8 else 1)
    tile_b = _round_up(_cdiv(B, n_tiles), 8)
    n_tiles = _cdiv(B, tile_b)
    return tile_b, n_tiles * tile_b, n_tiles


def _prepare_params(params, weight_dtype):
    """One-time padding / stacking / dtype conversion of parameters into
    lane-dense, kernel-ready layouts.  Run eagerly, not per forward call."""
    obs_dim, D = params["w0"].shape
    nb = params["w1"].shape[0]
    d_pad = _round_up(D, 128)
    obs_pad = _round_up(obs_dim, 128)

    def pad_to(a, shape, dtype=jnp.float32):
        a = jnp.pad(a, [(0, t - s) for s, t in zip(a.shape, shape)])
        return a.astype(dtype)

    # Zero padding is semantics-preserving: padded weight rows/cols, biases,
    # gammas and betas are all zero, so padded feature lanes stay exactly zero.
    w0_p = pad_to(params["w0"], (obs_pad, d_pad), weight_dtype)
    vec0 = pad_to(jnp.stack([params["b0"], params["g0"], params["be0"]], 0),
                  (3, d_pad))
    wblk = jnp.stack([params["w1"], params["w2"]], axis=1)            # (nb,2,D,D)
    wblk = pad_to(wblk, (nb, 2, d_pad, d_pad), weight_dtype)
    wblk = wblk.reshape(nb * 2, d_pad, d_pad)                         # [2i]=W1_i, [2i+1]=W2_i
    vecblk = pad_to(jnp.stack([params["b1"], params["g1"], params["be1"],
                               params["b2"], params["g2"], params["be2"]], 1),
                    (nb, 6, d_pad))

    meta = dict(obs_dim=obs_dim, d_real=D, num_blocks=nb,
                obs_pad=obs_pad, d_pad=d_pad)
    return dict(w0=w0_p, vec0=vec0, wblk=wblk, vecblk=vecblk), meta


def make_representation_fn(params, *, weight_dtype=jnp.bfloat16,
                           max_tile_b=512):
    """Build a jitted obs -> state function.  Parameter padding/stacking is
    hoisted here (done once); only obs is padded per call."""
    padded, meta = _prepare_params(params, weight_dtype)
    obs_dim, D = meta["obs_dim"], meta["d_real"]
    nb, obs_pad, d_pad = meta["num_blocks"], meta["obs_pad"], meta["d_pad"]
    w_bytes = jnp.dtype(weight_dtype).itemsize

    try:
        vmem_cap = int(0.75 * pltpu.get_tpu_info().vmem_capacity_bytes)
    except Exception:  # pragma: no cover - conservative fallback (v7x = 64 MiB)
        vmem_cap = 48 * 1024 * 1024

    kernel = functools.partial(representation_kernel, d_real=D,
                               unroll=(nb <= 8))

    # Resident (constant-index-map) blocks never change across the batch grid:
    # single VMEM buffer is enough.
    try:
        weight_mode = pl.Buffered(1)
    except Exception:  # pragma: no cover
        weight_mode = None

    def fwd(obs, padded):
        B = obs.shape[0]
        tile_b, b_pad, n_tiles = _choose_batch_tiling(B, max_tile_b)
        obs_p = jnp.pad(obs.astype(jnp.float32),
                        ((0, b_pad - B), (0, obs_pad - obs_dim)))

        # VMEM budget from the actual buffering plan:
        #   obs/out double-buffered (f32), weights single-buffered, + temps.
        est = (2 * tile_b * obs_pad * 4
               + 2 * tile_b * d_pad * 4
               + obs_pad * d_pad * w_bytes
               + 2 * nb * d_pad * d_pad * w_bytes
               + (3 + 6 * nb) * d_pad * 4
               + 8 * tile_b * d_pad * 4)
        vmem_limit = int(min(vmem_cap, max(est + (2 << 20), 16 << 20)))
        # TODO(synk): for large towers (2*nb*D^2*w_bytes of tens of MiB, e.g.
        # D=512 / nb=10 on v7x's 64 MiB VMEM), keep wblk in HBM
        # (memory_space=pl.ANY) and stream 2*D^2 per block with a manual
        # double-buffered make_async_copy instead of keeping it resident.

        flops = (2 * b_pad * obs_pad * d_pad
                 + nb * 2 * 2 * b_pad * d_pad * d_pad)
        transcendentals = b_pad * d_pad + (1 + 2 * nb) * b_pad
        bytes_accessed = (obs_p.size * 4
                          + (padded["w0"].size + padded["wblk"].size) * w_bytes
                          + (padded["vec0"].size + padded["vecblk"].size) * 4
                          + b_pad * d_pad * 4)

        out = pl.pallas_call(
            kernel,
            out_shape=jax.ShapeDtypeStruct((b_pad, d_pad), jnp.float32),
            grid=(n_tiles,),
            in_specs=[
                pl.BlockSpec((tile_b, obs_pad), lambda i: (i, 0)),       # obs tile
                pl.BlockSpec((obs_pad, d_pad), lambda i: (0, 0),         # W0
                             pipeline_mode=weight_mode),
                pl.BlockSpec((3, d_pad), lambda i: (0, 0),               # b0/g0/be0
                             pipeline_mode=weight_mode),
                pl.BlockSpec((2 * nb, d_pad, d_pad), lambda i: (0, 0, 0),  # W1/W2
                             pipeline_mode=weight_mode),
                pl.BlockSpec((nb, 6, d_pad), lambda i: (0, 0, 0),        # block vecs
                             pipeline_mode=weight_mode),
            ],
            out_specs=pl.BlockSpec((tile_b, d_pad), lambda i: (i, 0)),
            compiler_params=pltpu.CompilerParams(
                dimension_semantics=("parallel",),
                vmem_limit_bytes=vmem_limit,
            ),
            cost_estimate=pl.CostEstimate(
                flops=flops,
                transcendentals=transcendentals,
                bytes_accessed=bytes_accessed,
            ),
        )(obs_p, padded["w0"], padded["vec0"], padded["wblk"],
          padded["vecblk"])

        return out[:B, :D]

    jitted = jax.jit(fwd)
    return lambda obs: jitted(obs, padded)


# ----------------------------------------------------------------------------
# Parameters + pure-JAX reference (mirrors the PyTorch forward)
# ----------------------------------------------------------------------------
def make_params(key, obs_dim, state_dim, num_blocks):
    """Deterministic synthetic parameters (shapes match the PyTorch module,
    weights pre-transposed to (in, out) for x @ W)."""
    ks = jax.random.split(key, 1 + 2 * num_blocks)
    ortho = jax.nn.initializers.orthogonal(scale=math.sqrt(2.0))

    w0 = jax.random.normal(ks[0], (obs_dim, state_dim), jnp.float32) * 0.1
    b0 = jnp.zeros((state_dim,), jnp.float32)
    g0 = jnp.ones((state_dim,), jnp.float32)
    be0 = jnp.zeros((state_dim,), jnp.float32)

    w1 = jnp.stack([ortho(ks[1 + 2 * i], (state_dim, state_dim), jnp.float32)
                    for i in range(num_blocks)])
    w2 = jnp.stack([ortho(ks[2 + 2 * i], (state_dim, state_dim), jnp.float32)
                    for i in range(num_blocks)])
    b1 = jnp.zeros((num_blocks, state_dim), jnp.float32)   # init_fc zeros biases
    b2 = jnp.zeros((num_blocks, state_dim), jnp.float32)
    g1 = jnp.ones((num_blocks, state_dim), jnp.float32)
    be1 = jnp.zeros((num_blocks, state_dim), jnp.float32)
    g2 = jnp.ones((num_blocks, state_dim), jnp.float32)
    be2 = jnp.zeros((num_blocks, state_dim), jnp.float32)

    return dict(w0=w0, b0=b0, g0=g0, be0=be0,
                w1=w1, b1=b1, g1=g1, be1=be1,
                w2=w2, b2=b2, g2=g2, be2=be2)


def representation_reference(obs, params):
    """Pure-JAX reference mirroring the PyTorch forward, for validation."""
    def ln(x, g, b):
        mu = jnp.mean(x, axis=-1, keepdims=True)
        var = jnp.mean((x - mu) * (x - mu), axis=-1, keepdims=True)
        return (x - mu) * jax.lax.rsqrt(var + LN_EPS) * g + b

    x = obs @ params["w0"] + params["b0"]
    x = jnp.tanh(ln(x, params["g0"], params["be0"]))
    for i in range(params["w1"].shape[0]):
        h1 = jax.nn.relu(ln(x, params["g1"][i], params["be1"][i]))
        x1 = h1 @ params["w1"][i] + params["b1"][i]
        h2 = jax.nn.relu(ln(x1, params["g2"][i], params["be2"][i]))
        x2 = h2 @ params["w2"][i] + params["b2"][i]
        x = x + x2
    return x


if __name__ == "__main__":
    key = jax.random.PRNGKey(0)
    k_obs, k_par, k_obs2, k_par2 = jax.random.split(key, 4)

    # --- Small config: exercises the statically-unrolled residual tower. ---
    B, OBS_DIM, STATE_DIM, NUM_BLOCKS = 8, 24, 32, 2
    obs = jax.random.normal(k_obs, (B, OBS_DIM), jnp.float32)
    params = make_params(k_par, OBS_DIM, STATE_DIM, NUM_BLOCKS)
    ref = representation_reference(obs, params)

    # Exact-semantics check (f32 weights).
    out_f32 = jax.block_until_ready(
        make_representation_fn(params, weight_dtype=jnp.float32)(obs))
    assert out_f32.shape == (B, STATE_DIM)
    assert jnp.allclose(out_f32, ref, atol=1e-5, rtol=1e-5), "f32 mismatch"

    # Perf default: bf16 weights / matmul LHS, f32 accumulation + LN/tanh.
    out_bf16 = jax.block_until_ready(make_representation_fn(params)(obs))
    assert out_bf16.shape == (B, STATE_DIM)
    assert jnp.allclose(out_bf16, ref, atol=5e-2, rtol=5e-2), "bf16 mismatch"

    # --- Larger config: multi-tile batch grid + fori_loop residual tower. ---
    B2, NB2 = 48, 10
    obs2 = jax.random.normal(k_obs2, (B2, OBS_DIM), jnp.float32)
    params2 = make_params(k_par2, OBS_DIM, STATE_DIM, NB2)
    ref2 = representation_reference(obs2, params2)
    out2 = jax.block_until_ready(
        make_representation_fn(params2, weight_dtype=jnp.float32)(obs2))
    assert out2.shape == (B2, STATE_DIM)
    assert jnp.allclose(out2, ref2, atol=1e-4, rtol=1e-4), "deep-tower mismatch"

    print("KERNEL_OK")
</pallas_src>

<mosaic_0001>
module attributes {stable_mosaic.version = 11 : i64} {
  func.func @representation_kernel(%arg0: i32, %arg1: memref<8x128xf32, #tpu.memory_space<vmem>>, %arg2: memref<128x128xf32, #tpu.memory_space<vmem>>, %arg3: memref<3x128xf32, #tpu.memory_space<vmem>>, %arg4: memref<4x128x128xf32, #tpu.memory_space<vmem>>, %arg5: memref<2x6x128xf32, #tpu.memory_space<vmem>>, %arg6: memref<8x128xf32, #tpu.memory_space<vmem>>) attributes {dimension_semantics = [#tpu.dimension_semantics<parallel>], iteration_bounds = array<i64: 1>, scalar_prefetch = 0 : i64, scratch_operands = 0 : i64, tpu.core_type = #tpu.core_type<tc>, window_params = [{transform_indices = @transform_0, window_bounds = array<i64: 8, 128>}, {pipeline_mode = #tpu.pipeline_mode<synchronous>, transform_indices = @transform_1, window_bounds = array<i64: 128, 128>}, {pipeline_mode = #tpu.pipeline_mode<synchronous>, transform_indices = @transform_2, window_bounds = array<i64: 3, 128>}, {pipeline_mode = #tpu.pipeline_mode<synchronous>, transform_indices = @transform_3, window_bounds = array<i64: 4, 128, 128>}, {pipeline_mode = #tpu.pipeline_mode<synchronous>, transform_indices = @transform_4, window_bounds = array<i64: 2, 6, 128>}, {transform_indices = @transform_5, window_bounds = array<i64: 8, 128>}]} {
    %c0 = arith.constant 0 : index
    %c0_0 = arith.constant 0 : index
    %0 = vector.load %arg3[%c0, %c0_0] : memref<3x128xf32, #tpu.memory_space<vmem>>, vector<3x128xf32>
    %c0_1 = arith.constant 0 : index
    %c0_2 = arith.constant 0 : index
    %1 = vector.load %arg1[%c0_1, %c0_2] : memref<8x128xf32, #tpu.memory_space<vmem>>, vector<8x128xf32>
    %c0_3 = arith.constant 0 : index
    %c0_4 = arith.constant 0 : index
    %2 = vector.load %arg2[%c0_3, %c0_4] : memref<128x128xf32, #tpu.memory_space<vmem>>, vector<128x128xf32>
    %cst = arith.constant dense<0.000000e+00> : vector<8x128xf32>
    %3 = tpu.matmul %1, %2, %cst {dimension_numbers = #tpu.dot_dimension_numbers<[1], [0], [0], [1], [0, 0, 1, 1], [], []>} : vector<8x128xf32>, vector<128x128xf32>, vector<8x128xf32> -> vector<8x128xf32>
    %4 = vector.extract_strided_slice %0 {offsets = [0, 0], sizes = [1, 128], strides = [1, 1]} : vector<3x128xf32> to vector<1x128xf32>
    %5 = vector.broadcast %4 : vector<1x128xf32> to vector<8x128xf32>
    %6 = arith.addf %3, %5 : vector<8x128xf32>
    %7 = vector.extract_strided_slice %0 {offsets = [1, 0], sizes = [1, 128], strides = [1, 1]} : vector<3x128xf32> to vector<1x128xf32>
    %8 = vector.extract_strided_slice %0 {offsets = [2, 0], sizes = [1, 128], strides = [1, 1]} : vector<3x128xf32> to vector<1x128xf32>
    %cst_5 = arith.constant dense<0.000000e+00> : vector<8xf32>
    %9 = vector.multi_reduction <add>, %6, %cst_5 [1] : vector<8x128xf32> to vector<8xf32>
    %10 = vector.shape_cast %9 : vector<8xf32> to vector<8x1xf32>
    %cst_6 = arith.constant 3.125000e-02 : f32
    %11 = vector.broadcast %cst_6 : f32 to vector<8x1xf32>
    %12 = arith.mulf %10, %11 : vector<8x1xf32>
    %13 = arith.mulf %6, %6 : vector<8x128xf32>
    %cst_7 = arith.constant dense<0.000000e+00> : vector<8xf32>
    %14 = vector.multi_reduction <add>, %13, %cst_7 [1] : vector<8x128xf32> to vector<8xf32>
    %15 = vector.shape_cast %14 : vector<8xf32> to vector<8x1xf32>
    %cst_8 = arith.constant 3.125000e-02 : f32
    %16 = vector.broadcast %cst_8 : f32 to vector<8x1xf32>
    %17 = arith.mulf %15, %16 : vector<8x1xf32>
    %18 = arith.mulf %12, %12 : vector<8x1xf32>
    %19 = arith.subf %17, %18 : vector<8x1xf32>
    %20 = vector.broadcast %12 : vector<8x1xf32> to vector<8x128xf32>
    %21 = arith.subf %6, %20 : vector<8x128xf32>
    %cst_9 = arith.constant 9.99999974E-6 : f32
    %22 = vector.broadcast %cst_9 : f32 to vector<8x1xf32>
    %23 = arith.addf %19, %22 : vector<8x1xf32>
    %24 = math.rsqrt %23 : vector<8x1xf32>
    %25 = vector.broadcast %24 : vector<8x1xf32> to vector<8x128xf32>
    %26 = arith.mulf %21, %25 : vector<8x128xf32>
    %27 = vector.broadcast %7 : vector<1x128xf32> to vector<8x128xf32>
    %28 = arith.mulf %26, %27 : vector<8x128xf32>
    %29 = vector.broadcast %8 : vector<1x128xf32> to vector<8x128xf32>
    %30 = arith.addf %28, %29 : vector<8x128xf32>
    %31 = math.tanh %30 : vector<8x128xf32>
    %c0_10 = arith.constant 0 : index
    %c0_11 = arith.constant 0 : index
    %c0_12 = arith.constant 0 : index
    %32 = vector.load %arg4[%c0_10, %c0_11, %c0_12] : memref<4x128x128xf32, #tpu.memory_space<vmem>>, vector<1x128x128xf32>
    %33 = vector.shape_cast %32 : vector<1x128x128xf32> to vector<128x128xf32>
    %c1 = arith.constant 1 : index
    %c0_13 = arith.constant 0 : index
    %c0_14 = arith.constant 0 : index
    %34 = vector.load %arg4[%c1, %c0_13, %c0_14] : memref<4x128x128xf32, #tpu.memory_space<vmem>>, vector<1x128x128xf32>
    %35 = vector.shape_cast %34 : vector<1x128x128xf32> to vector<128x128xf32>
    %c0_15 = arith.constant 0 : index
    %c0_16 = arith.constant 0 : index
    %c0_17 = arith.constant 0 : index
    %36 = vector.load %arg5[%c0_15, %c0_16, %c0_17] : memref<2x6x128xf32, #tpu.memory_space<vmem>>, vector<1x6x128xf32>
    %37 = vector.shape_cast %36 : vector<1x6x128xf32> to vector<6x128xf32>
    %38 = vector.extract_strided_slice %37 {offsets = [1, 0], sizes = [1, 128], strides = [1, 1]} : vector<6x128xf32> to vector<1x128xf32>
    %39 = vector.extract_strided_slice %37 {offsets = [2, 0], sizes = [1, 128], strides = [1, 1]} : vector<6x128xf32> to vector<1x128xf32>
    %cst_18 = arith.constant dense<0.000000e+00> : vector<8xf32>
    %40 = vector.multi_reduction <add>, %31, %cst_18 [1] : vector<8x128xf32> to vector<8xf32>
    %41 = vector.shape_cast %40 : vector<8xf32> to vector<8x1xf32>
    %cst_19 = arith.constant 3.125000e-02 : f32
    %42 = vector.broadcast %cst_19 : f32 to vector<8x1xf32>
    %43 = arith.mulf %41, %42 : vector<8x1xf32>
    %44 = arith.mulf %31, %31 : vector<8x128xf32>
    %cst_20 = arith.constant dense<0.000000e+00> : vector<8xf32>
    %45 = vector.multi_reduction <add>, %44, %cst_20 [1] : vector<8x128xf32> to vector<8xf32>
    %46 = vector.shape_cast %45 : vector<8xf32> to vector<8x1xf32>
    %cst_21 = arith.constant 3.125000e-02 : f32
    %47 = vector.broadcast %cst_21 : f32 to vector<8x1xf32>
    %48 = arith.mulf %46, %47 : vector<8x1xf32>
    %49 = arith.mulf %43, %43 : vector<8x1xf32>
    %50 = arith.subf %48, %49 : vector<8x1xf32>
    %51 = vector.broadcast %43 : vector<8x1xf32> to vector<8x128xf32>
    %52 = arith.subf %31, %51 : vector<8x128xf32>
    %cst_22 = arith.constant 9.99999974E-6 : f32
    %53 = vector.broadcast %cst_22 : f32 to vector<8x1xf32>
    %54 = arith.addf %50, %53 : vector<8x1xf32>
    %55 = math.rsqrt %54 : vector<8x1xf32>
    %56 = vector.broadcast %55 : vector<8x1xf32> to vector<8x128xf32>
    %57 = arith.mulf %52, %56 : vector<8x128xf32>
    %58 = vector.broadcast %38 : vector<1x128xf32> to vector<8x128xf32>
    %59 = arith.mulf %57, %58 : vector<8x128xf32>
    %60 = vector.broadcast %39 : vector<1x128xf32> to vector<8x128xf32>
    %61 = arith.addf %59, %60 : vector<8x128xf32>
    %cst_23 = arith.constant 0.000000e+00 : f32
    %62 = vector.broadcast %cst_23 : f32 to vector<8x128xf32>
    %63 = arith.maximumf %61, %62 : vector<8x128xf32>
    %cst_24 = arith.constant dense<0.000000e+00> : vector<8x128xf32>
    %64 = tpu.matmul %63, %33, %cst_24 {dimension_numbers = #tpu.dot_dimension_numbers<[1], [0], [0], [1], [0, 0, 1, 1], [], []>} : vector<8x128xf32>, vector<128x128xf32>, vector<8x128xf32> -> vector<8x128xf32>
    %65 = vector.extract_strided_slice %37 {offsets = [0, 0], sizes = [1, 128], strides = [1, 1]} : vector<6x128xf32> to vector<1x128xf32>
    %66 = vector.broadcast %65 : vector<1x128xf32> to vector<8x128xf32>
    %67 = arith.addf %64, %66 : vector<8x128xf32>
    %68 = vector.extract_strided_slice %37 {offsets = [4, 0], sizes = [1, 128], strides = [1, 1]} : vector<6x128xf32> to vector<1x128xf32>
    %69 = vector.extract_strided_slice %37 {offsets = [5, 0], sizes = [1, 128], strides = [1, 1]} : vector<6x128xf32> to vector<1x128xf32>
    %cst_25 = arith.constant dense<0.000000e+00> : vector<8xf32>
    %70 = vector.multi_reduction <add>, %67, %cst_25 [1] : vector<8x128xf32> to vector<8xf32>
    %71 = vector.shape_cast %70 : vector<8xf32> to vector<8x1xf32>
    %cst_26 = arith.constant 3.125000e-02 : f32
    %72 = vector.broadcast %cst_26 : f32 to vector<8x1xf32>
    %73 = arith.mulf %71, %72 : vector<8x1xf32>
    %74 = arith.mulf %67, %67 : vector<8x128xf32>
    %cst_27 = arith.constant dense<0.000000e+00> : vector<8xf32>
    %75 = vector.multi_reduction <add>, %74, %cst_27 [1] : vector<8x128xf32> to vector<8xf32>
    %76 = vector.shape_cast %75 : vector<8xf32> to vector<8x1xf32>
    %cst_28 = arith.constant 3.125000e-02 : f32
    %77 = vector.broadcast %cst_28 : f32 to vector<8x1xf32>
    %78 = arith.mulf %76, %77 : vector<8x1xf32>
    %79 = arith.mulf %73, %73 : vector<8x1xf32>
    %80 = arith.subf %78, %79 : vector<8x1xf32>
    %81 = vector.broadcast %73 : vector<8x1xf32> to vector<8x128xf32>
    %82 = arith.subf %67, %81 : vector<8x128xf32>
    %cst_29 = arith.constant 9.99999974E-6 : f32
    %83 = vector.broadcast %cst_29 : f32 to vector<8x1xf32>
    %84 = arith.addf %80, %83 : vector<8x1xf32>
    %85 = math.rsqrt %84 : vector<8x1xf32>
    %86 = vector.broadcast %85 : vector<8x1xf32> to vector<8x128xf32>
    %87 = arith.mulf %82, %86 : vector<8x128xf32>
    %88 = vector.broadcast %68 : vector<1x128xf32> to vector<8x128xf32>
    %89 = arith.mulf %87, %88 : vector<8x128xf32>
    %90 = vector.broadcast %69 : vector<1x128xf32> to vector<8x128xf32>
    %91 = arith.addf %89, %90 : vector<8x128xf32>
    %cst_30 = arith.constant 0.000000e+00 : f32
    %92 = vector.broadcast %cst_30 : f32 to vector<8x128xf32>
    %93 = arith.maximumf %91, %92 : vector<8x128xf32>
    %cst_31 = arith.constant dense<0.000000e+00> : vector<8x128xf32>
    %94 = tpu.matmul %93, %35, %cst_31 {dimension_numbers = #tpu.dot_dimension_numbers<[1], [0], [0], [1], [0, 0, 1, 1], [], []>} : vector<8x128xf32>, vector<128x128xf32>, vector<8x128xf32> -> vector<8x128xf32>
    %95 = vector.extract_strided_slice %37 {offsets = [3, 0], sizes = [1, 128], strides = [1, 1]} : vector<6x128xf32> to vector<1x128xf32>
    %96 = vector.broadcast %95 : vector<1x128xf32> to vector<8x128xf32>
    %97 = arith.addf %94, %96 : vector<8x128xf32>
    %98 = arith.addf %31, %97 : vector<8x128xf32>
    %c2 = arith.constant 2 : index
    %c0_32 = arith.constant 0 : index
    %c0_33 = arith.constant 0 : index
    %99 = vector.load %arg4[%c2, %c0_32, %c0_33] : memref<4x128x128xf32, #tpu.memory_space<vmem>>, vector<1x128x128xf32>
    %100 = vector.shape_cast %99 : vector<1x128x128xf32> to vector<128x128xf32>
    %c3 = arith.constant 3 : index
    %c0_34 = arith.constant 0 : index
    %c0_35 = arith.constant 0 : index
    %101 = vector.load %arg4[%c3, %c0_34, %c0_35] : memref<4x128x128xf32, #tpu.memory_space<vmem>>, vector<1x128x128xf32>
    %102 = vector.shape_cast %101 : vector<1x128x128xf32> to vector<128x128xf32>
    %c1_36 = arith.constant 1 : index
    %c0_37 = arith.constant 0 : index
    %c0_38 = arith.constant 0 : index
    %103 = vector.load %arg5[%c1_36, %c0_37, %c0_38] : memref<2x6x128xf32, #tpu.memory_space<vmem>>, vector<1x6x128xf32>
    %104 = vector.shape_cast %103 : vector<1x6x128xf32> to vector<6x128xf32>
    %105 = vector.extract_strided_slice %104 {offsets = [1, 0], sizes = [1, 128], strides = [1, 1]} : vector<6x128xf32> to vector<1x128xf32>
    %106 = vector.extract_strided_slice %104 {offsets = [2, 0], sizes = [1, 128], strides = [1, 1]} : vector<6x128xf32> to vector<1x128xf32>
    %cst_39 = arith.constant dense<0.000000e+00> : vector<8xf32>
    %107 = vector.multi_reduction <add>, %98, %cst_39 [1] : vector<8x128xf32> to vector<8xf32>
    %108 = vector.shape_cast %107 : vector<8xf32> to vector<8x1xf32>
    %cst_40 = arith.constant 3.125000e-02 : f32
    %109 = vector.broadcast %cst_40 : f32 to vector<8x1xf32>
    %110 = arith.mulf %108, %109 : vector<8x1xf32>
    %111 = arith.mulf %98, %98 : vector<8x128xf32>
    %cst_41 = arith.constant dense<0.000000e+00> : vector<8xf32>
    %112 = vector.multi_reduction <add>, %111, %cst_41 [1] : vector<8x128xf32> to vector<8xf32>
    %113 = vector.shape_cast %112 : vector<8xf32> to vector<8x1xf32>
    %cst_42 = arith.constant 3.125000e-02 : f32
    %114 = vector.broadcast %cst_42 : f32 to vector<8x1xf32>
    %115 = arith.mulf %113, %114 : vector<8x1xf32>
    %116 = arith.mulf %110, %110 : vector<8x1xf32>
    %117 = arith.subf %115, %116 : vector<8x1xf32>
    %118 = vector.broadcast %110 : vector<8x1xf32> to vector<8x128xf32>
    %119 = arith.subf %98, %118 : vector<8x128xf32>
    %cst_43 = arith.constant 9.99999974E-6 : f32
    %120 = vector.broadcast %cst_43 : f32 to vector<8x1xf32>
    %121 = arith.addf %117, %120 : vector<8x1xf32>
    %122 = math.rsqrt %121 : vector<8x1xf32>
    %123 = vector.broadcast %122 : vector<8x1xf32> to vector<8x128xf32>
    %124 = arith.mulf %119, %123 : vector<8x128xf32>
    %125 = vector.broadcast %105 : vector<1x128xf32> to vector<8x128xf32>
    %126 = arith.mulf %124, %125 : vector<8x128xf32>
    %127 = vector.broadcast %106 : vector<1x128xf32> to vector<8x128xf32>
    %128 = arith.addf %126, %127 : vector<8x128xf32>
    %cst_44 = arith.constant 0.000000e+00 : f32
    %129 = vector.broadcast %cst_44 : f32 to vector<8x128xf32>
    %130 = arith.maximumf %128, %129 : vector<8x128xf32>
    %cst_45 = arith.constant dense<0.000000e+00> : vector<8x128xf32>
    %131 = tpu.matmul %130, %100, %cst_45 {dimension_numbers = #tpu.dot_dimension_numbers<[1], [0], [0], [1], [0, 0, 1, 1], [], []>} : vector<8x128xf32>, vector<128x128xf32>, vector<8x128xf32> -> vector<8x128xf32>
    %132 = vector.extract_strided_slice %104 {offsets = [0, 0], sizes = [1, 128], strides = [1, 1]} : vector<6x128xf32> to vector<1x128xf32>
    %133 = vector.broadcast %132 : vector<1x128xf32> to vector<8x128xf32>
    %134 = arith.addf %131, %133 : vector<8x128xf32>
    %135 = vector.extract_strided_slice %104 {offsets = [4, 0], sizes = [1, 128], strides = [1, 1]} : vector<6x128xf32> to vector<1x128xf32>
    %136 = vector.extract_strided_slice %104 {offsets = [5, 0], sizes = [1, 128], strides = [1, 1]} : vector<6x128xf32> to vector<1x128xf32>
    %cst_46 = arith.constant dense<0.000000e+00> : vector<8xf32>
    %137 = vector.multi_reduction <add>, %134, %cst_46 [1] : vector<8x128xf32> to vector<8xf32>
    %138 = vector.shape_cast %137 : vector<8xf32> to vector<8x1xf32>
    %cst_47 = arith.constant 3.125000e-02 : f32
    %139 = vector.broadcast %cst_47 : f32 to vector<8x1xf32>
    %140 = arith.mulf %138, %139 : vector<8x1xf32>
    %141 = arith.mulf %134, %134 : vector<8x128xf32>
    %cst_48 = arith.constant dense<0.000000e+00> : vector<8xf32>
    %142 = vector.multi_reduction <add>, %141, %cst_48 [1] : vector<8x128xf32> to vector<8xf32>
    %143 = vector.shape_cast %142 : vector<8xf32> to vector<8x1xf32>
    %cst_49 = arith.constant 3.125000e-02 : f32
    %144 = vector.broadcast %cst_49 : f32 to vector<8x1xf32>
    %145 = arith.mulf %143, %144 : vector<8x1xf32>
    %146 = arith.mulf %140, %140 : vector<8x1xf32>
    %147 = arith.subf %145, %146 : vector<8x1xf32>
    %148 = vector.broadcast %140 : vector<8x1xf32> to vector<8x128xf32>
    %149 = arith.subf %134, %148 : vector<8x128xf32>
    %cst_50 = arith.constant 9.99999974E-6 : f32
    %150 = vector.broadcast %cst_50 : f32 to vector<8x1xf32>
    %151 = arith.addf %147, %150 : vector<8x1xf32>
    %152 = math.rsqrt %151 : vector<8x1xf32>
    %153 = vector.broadcast %152 : vector<8x1xf32> to vector<8x128xf32>
    %154 = arith.mulf %149, %153 : vector<8x128xf32>
    %155 = vector.broadcast %135 : vector<1x128xf32> to vector<8x128xf32>
    %156 = arith.mulf %154, %155 : vector<8x128xf32>
    %157 = vector.broadcast %136 : vector<1x128xf32> to vector<8x128xf32>
    %158 = arith.addf %156, %157 : vector<8x128xf32>
    %cst_51 = arith.constant 0.000000e+00 : f32
    %159 = vector.broadcast %cst_51 : f32 to vector<8x128xf32>
    %160 = arith.maximumf %158, %159 : vector<8x128xf32>
    %cst_52 = arith.constant dense<0.000000e+00> : vector<8x128xf32>
    %161 = tpu.matmul %160, %102, %cst_52 {dimension_numbers = #tpu.dot_dimension_numbers<[1], [0], [0], [1], [0, 0, 1, 1], [], []>} : vector<8x128xf32>, vector<128x128xf32>, vector<8x128xf32> -> vector<8x128xf32>
    %162 = vector.extract_strided_slice %104 {offsets = [3, 0], sizes = [1, 128], strides = [1, 1]} : vector<6x128xf32> to vector<1x128xf32>
    %163 = vector.broadcast %162 : vector<1x128xf32> to vector<8x128xf32>
    %164 = arith.addf %161, %163 : vector<8x128xf32>
    %165 = arith.addf %98, %164 : vector<8x128xf32>
    %c0_53 = arith.constant 0 : index
    %c0_54 = arith.constant 0 : index
    %166 = vector.load %arg6[%c0_53, %c0_54] : memref<8x128xf32, #tpu.memory_space<vmem>>, vector<8x128xf32>
    tpu.vector_store %arg6[%c0_53, %c0_54], %165 {strides = array<i32>} : memref<8x128xf32, #tpu.memory_space<vmem>>, vector<8x128xf32>,
    return
  }
  func.func @transform_0(%arg0: i32) -> (i32, i32) {
    %c0_i32 = arith.constant 0 : i32
    %c0_i32_0 = arith.constant 0 : i32
    return %arg0, %c0_i32 : i32, i32
  }
  func.func @transform_1(%arg0: i32) -> (i32, i32) {
    %c0_i32 = arith.constant 0 : i32
    %c0_i32_0 = arith.constant 0 : i32
    %c0_i32_1 = arith.constant 0 : i32
    return %c0_i32, %c0_i32_0 : i32, i32
  }
  func.func @transform_2(%arg0: i32) -> (i32, i32) {
    %c0_i32 = arith.constant 0 : i32
    %c0_i32_0 = arith.constant 0 : i32
    %c0_i32_1 = arith.constant 0 : i32
    return %c0_i32, %c0_i32_0 : i32, i32
  }
  func.func @transform_3(%arg0: i32) -> (i32, i32, i32) {
    %c0_i32 = arith.constant 0 : i32
    %c0_i32_0 = arith.constant 0 : i32
    %c0_i32_1 = arith.constant 0 : i32
    %c0_i32_2 = arith.constant 0 : i32
    return %c0_i32, %c0_i32_0, %c0_i32_1 : i32, i32, i32
  }
  func.func @transform_4(%arg0: i32) -> (i32, i32, i32) {
    %c0_i32 = arith.constant 0 : i32
    %c0_i32_0 = arith.constant 0 : i32
    %c0_i32_1 = arith.constant 0 : i32
    %c0_i32_2 = arith.constant 0 : i32
    return %c0_i32, %c0_i32_0, %c0_i32_1 : i32, i32, i32
  }
  func.func @transform_5(%arg0: i32) -> (i32, i32) {
    %c0_i32 = arith.constant 0 : i32
    %c0_i32_0 = arith.constant 0 : i32
    return %arg0, %c0_i32 : i32, i32
  }
}

</mosaic_0001>

<llo_original>
// kernel: fwd.1
$region0: #{fwd.1}
  #allocation0 [shape = 'u32[]', space=smem, size = 0x4, offset = 0x4, fixed_abs, tag = 'smem constant byte address 0x4 - core index']
  #allocation1 [shape = 'u32[144,128]{1,0:T(1,128)}', space=vmem, size = 0x12000, scoped, tag = 'internal scratch']
  %s0 = inlined_call_operand.vmem [shape: f32[8,128], index: 0, kind: input, shape index: {}]
  %s1 = inlined_call_operand.hbm [shape: f32[128,128], index: 1, kind: input, shape index: {}]
  %s2 = inlined_call_operand.vmem [shape: f32[3,128], index: 2, kind: input, shape index: {}]
  %s3 = inlined_call_operand.hbm [shape: f32[4,128,128], index: 3, kind: input, shape index: {}]
  %s4 = inlined_call_operand.vmem [shape: f32[2,6,128], index: 4, kind: input, shape index: {}]
  %s5 = inlined_call_operand.hbm [shape: f32[8,128], index: 5, kind: output, shape index: {}]
  %s6 = sld [smem:[#allocation0]]
  $region38: #{fwd.1} parent=0
    _
  %s8 = ssub.s32 1, %s6
  %s9 = scalar_select 0, %s8, %s6
  $region1: #{fwd.1} parent=0
    #allocation2 [shape = 'u8[65536]{0}', space=vmem, size = 0x10000, scoped, tag = 'input window, operand 1, single buffered']
    #allocation3 [shape = 's32[1]{0}', space=sflag, size = 0x4, scoped, tag = 'scoped memory for fwd.1']
    #allocation4 [shape = 's32[1]{0}', space=sflag, size = 0x4, scoped, tag = 'scoped memory for fwd.1']
    #allocation5 [shape = 'u8[262144]{0}', space=vmem, size = 0x40000, scoped, tag = 'input window, operand 3, single buffered']
    #allocation6 [shape = 's32[1]{0}', space=sflag, size = 0x4, scoped, tag = 'scoped memory for fwd.1']
    #allocation7 [shape = 'u8[4096]{0}', space=vmem, size = 0x1000, scoped, tag = 'output window, operand 0, single buffered']
    %10 = vsyncpa [#allocation3], 0
    %11 = vsyncpa [#allocation6], 0
    %12 = vsyncpa [#allocation4], 0
    // Predicated region
    $region2: #{fwd.1} parent=1 // pred_check
      _
    $region3: #{fwd.1} parent=1 // pred_check_branch
      %14 = sbr.rel (0) target = $region5
    $region4: #{fwd.1} parent=1 // pred_region
      _
    $region5: #{fwd.1} parent=1 // pred_fallthru
      _
    // Predicated region
    $region6: #{fwd.1} parent=1 // pred_check
      _
    $region7: #{fwd.1} parent=1 // pred_check_branch
      %16 = sbr.rel (0) target = $region9
    $region8: #{fwd.1} parent=1 // pred_region
      %s18 = ssub.s32 2048, 2048
      %19 = vsyncadd [#allocation3], %s18
      %s20 = sshll.u32 [#allocation2], 4
      %s21 = int_to_ptr.vmem [resolvable:$true] %s20
      %26 = dma.hbm_to_vmem [thread:$0]  %s1, 2048, %s21, [#allocation3], 128, 128, 8
    $region9: #{fwd.1} parent=1 // pred_fallthru
      _
    // Predicated region
    $region10: #{fwd.1} parent=1 // pred_check
      _
    $region11: #{fwd.1} parent=1 // pred_check_branch
      %28 = sbr.rel (0) target = $region13
    $region12: #{fwd.1} parent=1 // pred_region
      _
    $region13: #{fwd.1} parent=1 // pred_fallthru
      _
    // Predicated region
    $region14: #{fwd.1} parent=1 // pred_check
      _
    $region15: #{fwd.1} parent=1 // pred_check_branch
      %30 = sbr.rel (0) target = $region17
    $region16: #{fwd.1} parent=1 // pred_region
      %s32 = ssub.s32 8192, 8192
      %33 = vsyncadd [#allocation6], %s32
      %s34 = sshll.u32 [#allocation5], 4
      %s35 = int_to_ptr.vmem [resolvable:$true] %s34
      %40 = dma.hbm_to_vmem [thread:$0]  %s3, 8192, %s35, [#allocation6], 128, 128, 8
    $region17: #{fwd.1} parent=1 // pred_fallthru
      _
    // Predicated region
    $region18: #{fwd.1} parent=1 // pred_check
      _
    $region19: #{fwd.1} parent=1 // pred_check_branch
      %42 = sbr.rel (0) target = $region21
    $region20: #{fwd.1} parent=1 // pred_region
      _
    $region21: #{fwd.1} parent=1 // pred_fallthru
      _
    // Predicated region
    $region22: #{fwd.1} parent=1 // pred_check
      _
    $region23: #{fwd.1} parent=1 // pred_check_branch
      %44 = sbr.rel (0) target = $region25
    $region24: #{fwd.1} parent=1 // pred_region
      %45 = dma.done [#allocation3], 2048
    $region25: #{fwd.1} parent=1 // pred_fallthru
      _
    // Predicated region
    $region26: #{fwd.1} parent=1 // pred_check
      _
    $region27: #{fwd.1} parent=1 // pred_check_branch
      %47 = sbr.rel (0) target = $region29
    $region28: #{fwd.1} parent=1 // pred_region
      %48 = dma.done [#allocation6], 8192
    $region29: #{fwd.1} parent=1 // pred_fallthru
      _
    %v49 = vld [vmem:[%s2] sm:$0x7]
    %v50 = vld [vmem:[%s0] sm:$0xff]
    %v51 = vld [vmem:[#allocation2] sm:$0xff]
    %v52 = vld [vmem:[#allocation2 + $0x8] sm:$0xff]
    %v53 = vld [vmem:[#allocation2 + $0x10] sm:$0xff]
    %v54 = vld [vmem:[#allocation2 + $0x18] sm:$0xff]
    %v55 = vld [vmem:[#allocation2 + $0x20] sm:$0xff]
    %v56 = vld [vmem:[#allocation2 + $0x28] sm:$0xff]
    %v57 = vld [vmem:[#allocation2 + $0x30] sm:$0xff]
    %v58 = vld [vmem:[#allocation2 + $0x38] sm:$0xff]
    %v59 = vld [vmem:[#allocation2 + $0x40] sm:$0xff]
    %v60 = vld [vmem:[#allocation2 + $0x48] sm:$0xff]
    %v61 = vld [vmem:[#allocation2 + $0x50] sm:$0xff]
    %v62 = vld [vmem:[#allocation2 + $0x58] sm:$0xff]
    %v63 = vld [vmem:[#allocation2 + $0x60] sm:$0xff]
    %v64 = vld [vmem:[#allocation2 + $0x68] sm:$0xff]
    %v65 = vld [vmem:[#allocation2 + $0x70] sm:$0xff]
    %v66 = vld [vmem:[#allocation2 + $0x78] sm:$0xff]
    %v67 = vlaneseq
    %v68 = vshrl.u32 %v67, 7
    %v69 = vsub.s32 0, %v68
    %v70 = vrot.slane %v49, %v69
    %71 = vmatprep.subr.mxu0 0.0
    %72 = vmatpush1.msra.mxu0 %v66
    %73 = vmatprep.subr.mxu0 0.0
    %74 = vmatpush1.msra.mxu0 %v65
    %75 = vmatprep.subr.mxu0 0.0
    %76 = vmatpush1.msra.mxu0 %v64
    %77 = vmatprep.subr.mxu0 0.0
    %78 = vmatpush1.msra.mxu0 %v63
    %79 = vmatprep.subr.mxu0 0.0
    %80 = vmatpush1.msra.mxu0 %v62
    %81 = vmatprep.subr.mxu0 0.0
    %82 = vmatpush1.msra.mxu0 %v61
    %83 = vmatprep.subr.mxu0 0.0
    %84 = vmatpush1.msra.mxu0 %v60
    %85 = vmatprep.subr.mxu0 0.0
    %86 = vmatpush1.msra.mxu0 %v59
    %87 = vmatprep.subr.mxu0 0.0
    %88 = vmatpush1.msra.mxu0 %v58
    %89 = vmatprep.subr.mxu0 0.0
    %90 = vmatpush1.msra.mxu0 %v57
    %91 = vmatprep.subr.mxu0 0.0
    %92 = vmatpush1.msra.mxu0 %v56
    %93 = vmatprep.subr.mxu0 0.0
    %94 = vmatpush1.msra.mxu0 %v55
    %95 = vmatprep.subr.mxu0 0.0
    %96 = vmatpush1.msra.mxu0 %v54
    %97 = vmatprep.subr.mxu0 0.0
    %98 = vmatpush1.msra.mxu0 %v53
    %99 = vmatprep.subr.mxu0 0.0
    %100 = vmatpush1.msra.mxu0 %v52
    %101 = vmatprep.subr.mxu0 0.0
    %102 = vmatpush1.msra.mxu0 %v51
    %103 = vmatprep.subr.mxu0 0.0
    %104 = vmatpush2.msra.mxu0 0.0
    %105 = vmatprep.subr.mxu0 0.0
    %106 = vmatpush2.msra.mxu0 0.0
    %107 = vmatprep.subr.mxu0 0.0
    %108 = vmatpush2.msra.mxu0 0.0
    %109 = vmatprep.subr.mxu0 0.0
    %110 = vmatpush2.msra.mxu0 0.0
    %111 = vmatprep.subr.mxu0 0.0
    %112 = vmatpush2.msra.mxu0 0.0
    %113 = vmatprep.subr.mxu0 0.0
    %114 = vmatpush2.msra.mxu0 0.0
    %115 = vmatprep.subr.mxu0 0.0
    %116 = vmatpush2.msra.mxu0 0.0
    %117 = vmatprep.subr.mxu0 0.0
    %118 = vmatpush2.msra.mxu0 0.0
    %119 = vmatprep.subr.mxu0 0.0
    %120 = vmatpush2.msra.mxu0 0.0
    %121 = vmatprep.subr.mxu0 0.0
    %122 = vmatpush2.msra.mxu0 0.0
    %123 = vmatprep.subr.mxu0 0.0
    %124 = vmatpush2.msra.mxu0 0.0
    %125 = vmatprep.subr.mxu0 0.0
    %126 = vmatpush2.msra.mxu0 0.0
    %127 = vmatprep.subr.mxu0 0.0
    %128 = vmatpush2.msra.mxu0 0.0
    %129 = vmatprep.subr.mxu0 0.0
    %130 = vmatpush2.msra.mxu0 0.0
    %131 = vmatprep.subr.mxu0 0.0
    %132 = vmatpush2.msra.mxu0 0.0
    %133 = vmatprep.subr.mxu0 0.0
    %134 = vmatpush2.msra.mxu0 0.0
    %135 = vmatprep.mubr.f32.mxu0 0.0
    %136 = vmatmul.mubr.f32.gmra.mxu0 %v50
    %v137 = vpop.f32.mrf.mxu0
    %v138 = vadd.f32 %v70, %v137
    %v139 = vpop.f32.mrf.mxu0
    %140 = vdwg.mxu0
    %141 = vadd.xlane.f32.xlu0 %v138
    %v142 = vpop.xlane.xlu0 %141
    %v143 = vmul.f32 %v142, 0.03125
    %v144 = vmul.f32 %v138, %v138
    %145 = vadd.xlane.f32.xlu0 %v144
    %v146 = vpop.xlane.xlu0 %145
    %v147 = vmul.f32 %v146, 0.03125
    %v148 = vmul.f32 %v143, %v143
    %v149 = vsub.f32 %v147, %v148
    %v150 = vsub.f32 %v138, %v143
    %v151 = vadd.f32 %v149, 1e-05
    %v152 = vrsqrt.pop %v151
    %v153 = vmul.f32 %v150, %v152
    %v154 = vlaneseq
    %v155 = vshrl.u32 %v154, 7
    %v156 = vsub.s32 1, %v155
    %v157 = vrot.slane %v49, %v156
    %v158 = vmul.f32 %v153, %v157
    %v159 = vlaneseq
    %v160 = vshrl.u32 %v159, 7
    %v161 = vsub.s32 2, %v160
    %v162 = vrot.slane %v49, %v161
    %v163 = vadd.f32 %v158, %v162
    %v164 = vtanh.pop %v163
    %v165 = vld [vmem:[#allocation5] sm:$0xff]
    %v166 = vld [vmem:[#allocation5 + $0x8] sm:$0xff]
    %v167 = vld [vmem:[#allocation5 + $0x10] sm:$0xff]
    %v168 = vld [vmem:[#allocation5 + $0x18] sm:$0xff]
    %v169 = vld [vmem:[#allocation5 + $0x20] sm:$0xff]
    %v170 = vld [vmem:[#allocation5 + $0x28] sm:$0xff]
    %v171 = vld [vmem:[#allocation5 + $0x30] sm:$0xff]
    %v172 = vld [vmem:[#allocation5 + $0x38] sm:$0xff]
    %v173 = vld [vmem:[#allocation5 + $0x40] sm:$0xff]
    %v174 = vld [vmem:[#allocation5 + $0x48] sm:$0xff]
    %v175 = vld [vmem:[#allocation5 + $0x50] sm:$0xff]
    %v176 = vld [vmem:[#allocation5 + $0x58] sm:$0xff]
    %v177 = vld [vmem:[#allocation5 + $0x60] sm:$0xff]
    %v178 = vld [vmem:[#allocation5 + $0x68] sm:$0xff]
    %v179 = vld [vmem:[#allocation5 + $0x70] sm:$0xff]
    %v180 = vld [vmem:[#allocation5 + $0x78] sm:$0xff]
    %s181 = scalar_lea.vmem [#allocation5], 128
    %v182 = vld [vmem:[%s181] sm:$0xff]
    %v183 = vld [vmem:[%s181 + $0x8] sm:$0xff]
    %v184 = vld [vmem:[%s181 + $0x10] sm:$0xff]
    %v185 = vld [vmem:[%s181 + $0x18] sm:$0xff]
    %v186 = vld [vmem:[%s181 + $0x20] sm:$0xff]
    %v187 = vld [vmem:[%s181 + $0x28] sm:$0xff]
    %v188 = vld [vmem:[%s181 + $0x30] sm:$0xff]
    %v189 = vld [vmem:[%s181 + $0x38] sm:$0xff]
    %v190 = vld [vmem:[%s181 + $0x40] sm:$0xff]
    %v191 = vld [vmem:[%s181 + $0x48] sm:$0xff]
    %v192 = vld [vmem:[%s181 + $0x50] sm:$0xff]
    %v193 = vld [vmem:[%s181 + $0x58] sm:$0xff]
    %v194 = vld [vmem:[%s181 + $0x60] sm:$0xff]
    %v195 = vld [vmem:[%s181 + $0x68] sm:$0xff]
    %v196 = vld [vmem:[%s181 + $0x70] sm:$0xff]
    %v197 = vld [vmem:[%s181 + $0x78] sm:$0xff]
    %v198 = vld [vmem:[%s4] sm:$0x3f]
    %199 = vadd.xlane.f32.xlu0 %v164
    %v200 = vpop.xlane.xlu0 %199
    %v201 = vmul.f32 %v200, 0.03125
    %v202 = vmul.f32 %v164, %v164
    %203 = vadd.xlane.f32.xlu0 %v202
    %v204 = vpop.xlane.xlu0 %203
    %v205 = vmul.f32 %v204, 0.03125
    %v206 = vmul.f32 %v201, %v201
    %v207 = vsub.f32 %v205, %v206
    %v208 = vsub.f32 %v164, %v201
    %v209 = vadd.f32 %v207, 1e-05
    %v210 = vrsqrt.pop %v209
    %v211 = vmul.f32 %v208, %v210
    %v212 = vlaneseq
    %v213 = vshrl.u32 %v212, 7
    %v214 = vsub.s32 1, %v213
    %v215 = vrot.slane %v198, %v214
    %v216 = vmul.f32 %v211, %v215
    %v217 = vlaneseq
    %v218 = vshrl.u32 %v217, 7
    %v219 = vsub.s32 2, %v218
    %v220 = vrot.slane %v198, %v219
    %v221 = vadd.f32 %v216, %v220
    %v222 = vmax.f32 %v221, 0.0
    %v223 = vlaneseq
    %v224 = vshrl.u32 %v223, 7
    %v225 = vsub.s32 0, %v224
    %v226 = vrot.slane %v198, %v225
    %227 = vmatprep.subr.mxu0 0.0
    %228 = vmatpush1.msra.mxu0 %v180
    %229 = vmatprep.subr.mxu0 0.0
    %230 = vmatpush1.msra.mxu0 %v179
    %231 = vmatprep.subr.mxu0 0.0
    %232 = vmatpush1.msra.mxu0 %v178
    %233 = vmatprep.subr.mxu0 0.0
    %234 = vmatpush1.msra.mxu0 %v177
    %235 = vmatprep.subr.mxu0 0.0
    %236 = vmatpush1.msra.mxu0 %v176
    %237 = vmatprep.subr.mxu0 0.0
    %238 = vmatpush1.msra.mxu0 %v175
    %239 = vmatprep.subr.mxu0 0.0
    %240 = vmatpush1.msra.mxu0 %v174
    %241 = vmatprep.subr.mxu0 0.0
    %242 = vmatpush1.msra.mxu0 %v173
    %243 = vmatprep.subr.mxu0 0.0
    %244 = vmatpush1.msra.mxu0 %v172
    %245 = vmatprep.subr.mxu0 0.0
    %246 = vmatpush1.msra.mxu0 %v171
    %247 = vmatprep.subr.mxu0 0.0
    %248 = vmatpush1.msra.mxu0 %v170
    %249 = vmatprep.subr.mxu0 0.0
    %250 = vmatpush1.msra.mxu0 %v169
    %251 = vmatprep.subr.mxu0 0.0
    %252 = vmatpush1.msra.mxu0 %v168
    %253 = vmatprep.subr.mxu0 0.0
    %254 = vmatpush1.msra.mxu0 %v167
    %255 = vmatprep.subr.mxu0 0.0
    %256 = vmatpush1.msra.mxu0 %v166
    %257 = vmatprep.subr.mxu0 0.0
    %258 = vmatpush1.msra.mxu0 %v165
    %259 = vmatprep.subr.mxu0 0.0
    %260 = vmatpush2.msra.mxu0 0.0
    %261 = vmatprep.subr.mxu0 0.0
    %262 = vmatpush2.msra.mxu0 0.0
    %263 = vmatprep.subr.mxu0 0.0
    %264 = vmatpush2.msra.mxu0 0.0
    %265 = vmatprep.subr.mxu0 0.0
    %266 = vmatpush2.msra.mxu0 0.0
    %267 = vmatprep.subr.mxu0 0.0
    %268 = vmatpush2.msra.mxu0 0.0
    %269 = vmatprep.subr.mxu0 0.0
    %270 = vmatpush2.msra.mxu0 0.0
    %271 = vmatprep.subr.mxu0 0.0
    %272 = vmatpush2.msra.mxu0 0.0
    %273 = vmatprep.subr.mxu0 0.0
    %274 = vmatpush2.msra.mxu0 0.0
    %275 = vmatprep.subr.mxu0 0.0
    %276 = vmatpush2.msra.mxu0 0.0
    %277 = vmatprep.subr.mxu0 0.0
    %278 = vmatpush2.msra.mxu0 0.0
    %279 = vmatprep.subr.mxu0 0.0
    %280 = vmatpush2.msra.mxu0 0.0
    %281 = vmatprep.subr.mxu0 0.0
    %282 = vmatpush2.msra.mxu0 0.0
    %283 = vmatprep.subr.mxu0 0.0
    %284 = vmatpush2.msra.mxu0 0.0
    %285 = vmatprep.subr.mxu0 0.0
    %286 = vmatpush2.msra.mxu0 0.0
    %287 = vmatprep.subr.mxu0 0.0
    %288 = vmatpush2.msra.mxu0 0.0
    %289 = vmatprep.subr.mxu0 0.0
    %290 = vmatpush2.msra.mxu0 0.0
    %291 = vmatprep.mubr.f32.mxu0 0.0
    %292 = vmatmul.mubr.f32.gmra.mxu0 %v222
    %v293 = vpop.f32.mrf.mxu0
    %v294 = vadd.f32 %v226, %v293
    %v295 = vpop.f32.mrf.mxu0
    %296 = vdwg.mxu0
    %297 = vadd.xlane.f32.xlu0 %v294
    %v298 = vpop.xlane.xlu0 %297
    %v299 = vmul.f32 %v298, 0.03125
    %v300 = vmul.f32 %v294, %v294
    %301 = vadd.xlane.f32.xlu0 %v300
    %v302 = vpop.xlane.xlu0 %301
    %v303 = vmul.f32 %v302, 0.03125
    %v304 = vmul.f32 %v299, %v299
    %v305 = vsub.f32 %v303, %v304
    %v306 = vsub.f32 %v294, %v299
    %v307 = vadd.f32 %v305, 1e-05
    %v308 = vrsqrt.pop %v307
    %v309 = vmul.f32 %v306, %v308
    %v310 = vlaneseq
    %v311 = vshrl.u32 %v310, 7
    %v312 = vsub.s32 4, %v311
    %v313 = vrot.slane %v198, %v312
    %v314 = vmul.f32 %v309, %v313
    %v315 = vlaneseq
    %v316 = vshrl.u32 %v315, 7
    %v317 = vsub.s32 5, %v316
    %v318 = vrot.slane %v198, %v317
    %v319 = vadd.f32 %v314, %v318
    %v320 = vmax.f32 %v319, 0.0
    %v321 = vlaneseq
    %v322 = vshrl.u32 %v321, 7
    %v323 = vsub.s32 3, %v322
    %v324 = vrot.slane %v198, %v323
    %325 = vmatprep.subr.mxu0 0.0
    %326 = vmatpush1.msra.mxu0 %v197
    %327 = vmatprep.subr.mxu0 0.0
    %328 = vmatpush1.msra.mxu0 %v196
    %329 = vmatprep.subr.mxu0 0.0
    %330 = vmatpush1.msra.mxu0 %v195
    %331 = vmatprep.subr.mxu0 0.0
    %332 = vmatpush1.msra.mxu0 %v194
    %333 = vmatprep.subr.mxu0 0.0
    %334 = vmatpush1.msra.mxu0 %v193
    %335 = vmatprep.subr.mxu0 0.0
    %336 = vmatpush1.msra.mxu0 %v192
    %337 = vmatprep.subr.mxu0 0.0
    %338 = vmatpush1.msra.mxu0 %v191
    %339 = vmatprep.subr.mxu0 0.0
    %340 = vmatpush1.msra.mxu0 %v190
    %341 = vmatprep.subr.mxu0 0.0
    %342 = vmatpush1.msra.mxu0 %v189
    %343 = vmatprep.subr.mxu0 0.0
    %344 = vmatpush1.msra.mxu0 %v188
    %345 = vmatprep.subr.mxu0 0.0
    %346 = vmatpush1.msra.mxu0 %v187
    %347 = vmatprep.subr.mxu0 0.0
    %348 = vmatpush1.msra.mxu0 %v186
    %349 = vmatprep.subr.mxu0 0.0
    %350 = vmatpush1.msra.mxu0 %v185
    %351 = vmatprep.subr.mxu0 0.0
    %352 = vmatpush1.msra.mxu0 %v184
    %353 = vmatprep.subr.mxu0 0.0
    %354 = vmatpush1.msra.mxu0 %v183
    %355 = vmatprep.subr.mxu0 0.0
    %356 = vmatpush1.msra.mxu0 %v182
    %357 = vmatprep.subr.mxu0 0.0
    %358 = vmatpush2.msra.mxu0 0.0
    %359 = vmatprep.subr.mxu0 0.0
    %360 = vmatpush2.msra.mxu0 0.0
    %361 = vmatprep.subr.mxu0 0.0
    %362 = vmatpush2.msra.mxu0 0.0
    %363 = vmatprep.subr.mxu0 0.0
    %364 = vmatpush2.msra.mxu0 0.0
    %365 = vmatprep.subr.mxu0 0.0
    %366 = vmatpush2.msra.mxu0 0.0
    %367 = vmatprep.subr.mxu0 0.0
    %368 = vmatpush2.msra.mxu0 0.0
    %369 = vmatprep.subr.mxu0 0.0
    %370 = vmatpush2.msra.mxu0 0.0
    %371 = vmatprep.subr.mxu0 0.0
    %372 = vmatpush2.msra.mxu0 0.0
    %373 = vmatprep.subr.mxu0 0.0
    %374 = vmatpush2.msra.mxu0 0.0
    %375 = vmatprep.subr.mxu0 0.0
    %376 = vmatpush2.msra.mxu0 0.0
    %377 = vmatprep.subr.mxu0 0.0
    %378 = vmatpush2.msra.mxu0 0.0
    %379 = vmatprep.subr.mxu0 0.0
    %380 = vmatpush2.msra.mxu0 0.0
    %381 = vmatprep.subr.mxu0 0.0
    %382 = vmatpush2.msra.mxu0 0.0
    %383 = vmatprep.subr.mxu0 0.0
    %384 = vmatpush2.msra.mxu0 0.0
    %385 = vmatprep.subr.mxu0 0.0
    %386 = vmatpush2.msra.mxu0 0.0
    %387 = vmatprep.subr.mxu0 0.0
    %388 = vmatpush2.msra.mxu0 0.0
    %389 = vmatprep.mubr.f32.mxu0 0.0
    %390 = vmatmul.mubr.f32.gmra.mxu0 %v320
    %v391 = vpop.f32.mrf.mxu0
    %v392 = vadd.f32 %v324, %v391
    %v393 = vpop.f32.mrf.mxu0
    %394 = vdwg.mxu0
    %v395 = vadd.f32 %v164, %v392
    %s396 = scalar_lea.vmem [#allocation5], 256
    %v397 = vld [vmem:[%s396] sm:$0xff]
    %v398 = vld [vmem:[%s396 + $0x8] sm:$0xff]
    %v399 = vld [vmem:[%s396 + $0x10] sm:$0xff]
    %v400 = vld [vmem:[%s396 + $0x18] sm:$0xff]
    %v401 = vld [vmem:[%s396 + $0x20] sm:$0xff]
    %v402 = vld [vmem:[%s396 + $0x28] sm:$0xff]
    %v403 = vld [vmem:[%s396 + $0x30] sm:$0xff]
    %v404 = vld [vmem:[%s396 + $0x38] sm:$0xff]
    %v405 = vld [vmem:[%s396 + $0x40] sm:$0xff]
    %v406 = vld [vmem:[%s396 + $0x48] sm:$0xff]
    %v407 = vld [vmem:[%s396 + $0x50] sm:$0xff]
    %v408 = vld [vmem:[%s396 + $0x58] sm:$0xff]
    %v409 = vld [vmem:[%s396 + $0x60] sm:$0xff]
    %v410 = vld [vmem:[%s396 + $0x68] sm:$0xff]
    %v411 = vld [vmem:[%s396 + $0x70] sm:$0xff]
    %v412 = vld [vmem:[%s396 + $0x78] sm:$0xff]
    %s413 = scalar_lea.vmem [#allocation5], 384
    %v414 = vld [vmem:[%s413] sm:$0xff]
    %v415 = vld [vmem:[%s413 + $0x8] sm:$0xff]
    %v416 = vld [vmem:[%s413 + $0x10] sm:$0xff]
    %v417 = vld [vmem:[%s413 + $0x18] sm:$0xff]
    %v418 = vld [vmem:[%s413 + $0x20] sm:$0xff]
    %v419 = vld [vmem:[%s413 + $0x28] sm:$0xff]
    %v420 = vld [vmem:[%s413 + $0x30] sm:$0xff]
    %v421 = vld [vmem:[%s413 + $0x38] sm:$0xff]
    %v422 = vld [vmem:[%s413 + $0x40] sm:$0xff]
    %v423 = vld [vmem:[%s413 + $0x48] sm:$0xff]
    %v424 = vld [vmem:[%s413 + $0x50] sm:$0xff]
    %v425 = vld [vmem:[%s413 + $0x58] sm:$0xff]
    %v426 = vld [vmem:[%s413 + $0x60] sm:$0xff]
    %v427 = vld [vmem:[%s413 + $0x68] sm:$0xff]
    %v428 = vld [vmem:[%s413 + $0x70] sm:$0xff]
    %v429 = vld [vmem:[%s413 + $0x78] sm:$0xff]
    %s430 = scalar_lea.vmem %s4, 8
    %v431 = vld [vmem:[%s430] sm:$0x3f]
    %432 = vadd.xlane.f32.xlu0 %v395
    %v433 = vpop.xlane.xlu0 %432
    %v434 = vmul.f32 %v433, 0.03125
    %v435 = vmul.f32 %v395, %v395
    %436 = vadd.xlane.f32.xlu0 %v435
    %v437 = vpop.xlane.xlu0 %436
    %v438 = vmul.f32 %v437, 0.03125
    %v439 = vmul.f32 %v434, %v434
    %v440 = vsub.f32 %v438, %v439
    %v441 = vsub.f32 %v395, %v434
    %v442 = vadd.f32 %v440, 1e-05
    %v443 = vrsqrt.pop %v442
    %v444 = vmul.f32 %v441, %v443
    %v445 = vlaneseq
    %v446 = vshrl.u32 %v445, 7
    %v447 = vsub.s32 1, %v446
    %v448 = vrot.slane %v431, %v447
    %v449 = vmul.f32 %v444, %v448
    %v450 = vlaneseq
    %v451 = vshrl.u32 %v450, 7
    %v452 = vsub.s32 2, %v451
    %v453 = vrot.slane %v431, %v452
    %v454 = vadd.f32 %v449, %v453
    %v455 = vmax.f32 %v454, 0.0
    %v456 = vlaneseq
    %v457 = vshrl.u32 %v456, 7
    %v458 = vsub.s32 0, %v457
    %v459 = vrot.slane %v431, %v458
    %460 = vmatprep.subr.mxu0 0.0
    %461 = vmatpush1.msra.mxu0 %v412
    %462 = vmatprep.subr.mxu0 0.0
    %463 = vmatpush1.msra.mxu0 %v411
    %464 = vmatprep.subr.mxu0 0.0
    %465 = vmatpush1.msra.mxu0 %v410
    %466 = vmatprep.subr.mxu0 0.0
    %467 = vmatpush1.msra.mxu0 %v409
    %468 = vmatprep.subr.mxu0 0.0
    %469 = vmatpush1.msra.mxu0 %v408
    %470 = vmatprep.subr.mxu0 0.0
    %471 = vmatpush1.msra.mxu0 %v407
    %472 = vmatprep.subr.mxu0 0.0
    %473 = vmatpush1.msra.mxu0 %v406
    %474 = vmatprep.subr.mxu0 0.0
    %475 = vmatpush1.msra.mxu0 %v405
    %476 = vmatprep.subr.mxu0 0.0
    %477 = vmatpush1.msra.mxu0 %v404
    %478 = vmatprep.subr.mxu0 0.0
    %479 = vmatpush1.msra.mxu0 %v403
    %480 = vmatprep.subr.mxu0 0.0
    %481 = vmatpush1.msra.mxu0 %v402
    %482 = vmatprep.subr.mxu0 0.0
    %483 = vmatpush1.msra.mxu0 %v401
    %484 = vmatprep.subr.mxu0 0.0
    %485 = vmatpush1.msra.mxu0 %v400
    %486 = vmatprep.subr.mxu0 0.0
    %487 = vmatpush1.msra.mxu0 %v399
    %488 = vmatprep.subr.mxu0 0.0
    %489 = vmatpush1.msra.mxu0 %v398
    %490 = vmatprep.subr.mxu0 0.0
    %491 = vmatpush1.msra.mxu0 %v397
    %492 = vmatprep.subr.mxu0 0.0
    %493 = vmatpush2.msra.mxu0 0.0
    %494 = vmatprep.subr.mxu0 0.0
    %495 = vmatpush2.msra.mxu0 0.0
    %496 = vmatprep.subr.mxu0 0.0
    %497 = vmatpush2.msra.mxu0 0.0
    %498 = vmatprep.subr.mxu0 0.0
    %499 = vmatpush2.msra.mxu0 0.0
    %500 = vmatprep.subr.mxu0 0.0
    %501 = vmatpush2.msra.mxu0 0.0
    %502 = vmatprep.subr.mxu0 0.0
    %503 = vmatpush2.msra.mxu0 0.0
    %504 = vmatprep.subr.mxu0 0.0
    %505 = vmatpush2.msra.mxu0 0.0
    %506 = vmatprep.subr.mxu0 0.0
    %507 = vmatpush2.msra.mxu0 0.0
    %508 = vmatprep.subr.mxu0 0.0
    %509 = vmatpush2.msra.mxu0 0.0
    %510 = vmatprep.subr.mxu0 0.0
    %511 = vmatpush2.msra.mxu0 0.0
    %512 = vmatprep.subr.mxu0 0.0
    %513 = vmatpush2.msra.mxu0 0.0
    %514 = vmatprep.subr.mxu0 0.0
    %515 = vmatpush2.msra.mxu0 0.0
    %516 = vmatprep.subr.mxu0 0.0
    %517 = vmatpush2.msra.mxu0 0.0
    %518 = vmatprep.subr.mxu0 0.0
    %519 = vmatpush2.msra.mxu0 0.0
    %520 = vmatprep.subr.mxu0 0.0
    %521 = vmatpush2.msra.mxu0 0.0
    %522 = vmatprep.subr.mxu0 0.0
    %523 = vmatpush2.msra.mxu0 0.0
    %524 = vmatprep.mubr.f32.mxu0 0.0
    %525 = vmatmul.mubr.f32.gmra.mxu0 %v455
    %v526 = vpop.f32.mrf.mxu0
    %v527 = vadd.f32 %v459, %v526
    %v528 = vpop.f32.mrf.mxu0
    %529 = vdwg.mxu0
    %530 = vadd.xlane.f32.xlu0 %v527
    %v531 = vpop.xlane.xlu0 %530
    %v532 = vmul.f32 %v531, 0.03125
    %v533 = vmul.f32 %v527, %v527
    %534 = vadd.xlane.f32.xlu0 %v533
    %v535 = vpop.xlane.xlu0 %534
    %v536 = vmul.f32 %v535, 0.03125
    %v537 = vmul.f32 %v532, %v532
    %v538 = vsub.f32 %v536, %v537
    %v539 = vsub.f32 %v527, %v532
    %v540 = vadd.f32 %v538, 1e-05
    %v541 = vrsqrt.pop %v540
    %v542 = vmul.f32 %v539, %v541
    %v543 = vlaneseq
    %v544 = vshrl.u32 %v543, 7
    %v545 = vsub.s32 4, %v544
    %v546 = vrot.slane %v431, %v545
    %v547 = vmul.f32 %v542, %v546
    %v548 = vlaneseq
    %v549 = vshrl.u32 %v548, 7
    %v550 = vsub.s32 5, %v549
    %v551 = vrot.slane %v431, %v550
    %v552 = vadd.f32 %v547, %v551
    %v553 = vmax.f32 %v552, 0.0
    %v554 = vlaneseq
    %v555 = vshrl.u32 %v554, 7
    %v556 = vsub.s32 3, %v555
    %v557 = vrot.slane %v431, %v556
    %558 = vmatprep.subr.mxu0 0.0
    %559 = vmatpush1.msra.mxu0 %v429
    %560 = vmatprep.subr.mxu0 0.0
    %561 = vmatpush1.msra.mxu0 %v428
    %562 = vmatprep.subr.mxu0 0.0
    %563 = vmatpush1.msra.mxu0 %v427
    %564 = vmatprep.subr.mxu0 0.0
    %565 = vmatpush1.msra.mxu0 %v426
    %566 = vmatprep.subr.mxu0 0.0
    %567 = vmatpush1.msra.mxu0 %v425
    %568 = vmatprep.subr.mxu0 0.0
    %569 = vmatpush1.msra.mxu0 %v424
    %570 = vmatprep.subr.mxu0 0.0
    %571 = vmatpush1.msra.mxu0 %v423
    %572 = vmatprep.subr.mxu0 0.0
    %573 = vmatpush1.msra.mxu0 %v422
    %574 = vmatprep.subr.mxu0 0.0
    %575 = vmatpush1.msra.mxu0 %v421
    %576 = vmatprep.subr.mxu0 0.0
    %577 = vmatpush1.msra.mxu0 %v420
    %578 = vmatprep.subr.mxu0 0.0
    %579 = vmatpush1.msra.mxu0 %v419
    %580 = vmatprep.subr.mxu0 0.0
    %581 = vmatpush1.msra.mxu0 %v418
    %582 = vmatprep.subr.mxu0 0.0
    %583 = vmatpush1.msra.mxu0 %v417
    %584 = vmatprep.subr.mxu0 0.0
    %585 = vmatpush1.msra.mxu0 %v416
    %586 = vmatprep.subr.mxu0 0.0
    %587 = vmatpush1.msra.mxu0 %v415
    %588 = vmatprep.subr.mxu0 0.0
    %589 = vmatpush1.msra.mxu0 %v414
    %590 = vmatprep.subr.mxu0 0.0
    %591 = vmatpush2.msra.mxu0 0.0
    %592 = vmatprep.subr.mxu0 0.0
    %593 = vmatpush2.msra.mxu0 0.0
    %594 = vmatprep.subr.mxu0 0.0
    %595 = vmatpush2.msra.mxu0 0.0
    %596 = vmatprep.subr.mxu0 0.0
    %597 = vmatpush2.msra.mxu0 0.0
    %598 = vmatprep.subr.mxu0 0.0
    %599 = vmatpush2.msra.mxu0 0.0
    %600 = vmatprep.subr.mxu0 0.0
    %601 = vmatpush2.msra.mxu0 0.0
    %602 = vmatprep.subr.mxu0 0.0
    %603 = vmatpush2.msra.mxu0 0.0
    %604 = vmatprep.subr.mxu0 0.0
    %605 = vmatpush2.msra.mxu0 0.0
    %606 = vmatprep.subr.mxu0 0.0
    %607 = vmatpush2.msra.mxu0 0.0
    %608 = vmatprep.subr.mxu0 0.0
    %609 = vmatpush2.msra.mxu0 0.0
    %610 = vmatprep.subr.mxu0 0.0
    %611 = vmatpush2.msra.mxu0 0.0
    %612 = vmatprep.subr.mxu0 0.0
    %613 = vmatpush2.msra.mxu0 0.0
    %614 = vmatprep.subr.mxu0 0.0
    %615 = vmatpush2.msra.mxu0 0.0
    %616 = vmatprep.subr.mxu0 0.0
    %617 = vmatpush2.msra.mxu0 0.0
    %618 = vmatprep.subr.mxu0 0.0
    %619 = vmatpush2.msra.mxu0 0.0
    %620 = vmatprep.subr.mxu0 0.0
    %621 = vmatpush2.msra.mxu0 0.0
    %622 = vmatprep.mubr.f32.mxu0 0.0
    %623 = vmatmul.mubr.f32.gmra.mxu0 %v553
    %v624 = vpop.f32.mrf.mxu0
    %v625 = vadd.f32 %v557, %v624
    %v626 = vpop.f32.mrf.mxu0
    %627 = vdwg.mxu0
    %v628 = vadd.f32 %v395, %v625
    %629 = vst [vmem:[#allocation7] sm:$0xff] %v628
    // Predicated region
    $region30: #{fwd.1} parent=1 // pred_check
      _
    $region31: #{fwd.1} parent=1 // pred_check_branch
      %631 = sbr.rel (0) target = $region33
    $region32: #{fwd.1} parent=1 // pred_region
      %s633 = ssub.s32 128, 128
      %634 = vsyncadd [#allocation4], %s633
      %s636 = sshll.u32 [#allocation7], 4
      %s637 = int_to_ptr.vmem [resolvable:$true] %s636
      %639 = dma.vmem_to_hbm [thread:$0]  %s637, 128, %s5, [#allocation4]
    $region33: #{fwd.1} parent=1 // pred_fallthru
      _
    // Predicated region
    $region34: #{fwd.1} parent=1 // pred_check
      _
    $region35: #{fwd.1} parent=1 // pred_check_branch
      %641 = sbr.rel (0) target = $region37
    $region36: #{fwd.1} parent=1 // pred_region
      %642 = dma.done [#allocation4], 128
    $region37: #{fwd.1} parent=1 // pred_fallthru
      _
    %643 = vsyncpa [#allocation3], 1
    %644 = vsyncpa [#allocation6], 1
    %645 = vsyncpa [#allocation4], 1

</llo_original>
